<compile_context>
chip_gen: v7x
topology: tpu7x:2x2x1
jax: 0.10.0
libtpu: 0.0.40
codegen_flags: <defaults>
</compile_context>

<pallas_src>
import functools

import jax
import jax.numpy as jnp
from jax.experimental import pallas as pl
from jax.experimental.pallas import tpu as pltpu


_OVERLAPS_EPS = 1e-6   # internal eps of bbox_overlaps (union clamp)


def _cdiv(a, b):
    return -(-a // b)


# ---------------------------------------------------------------------------
# per-generation tuning
# ---------------------------------------------------------------------------
def _device_tuning():
    """Returns (tensorcores_per_kernel, max_tile_s, vmem_limit_bytes)."""
    kind = ""
    try:
        kind = (jax.local_devices()[0].device_kind or "").lower()
    except Exception:
        pass
    if "v7" in kind or "tpu7" in kind:
        # 2 TensorCores per chip, 64 MiB VMEM per TC: keep tile modest and
        # split the reduction across the two cores (when it pads nothing).
        return 2, 2048, 48 << 20
    if "v6" in kind or "trillium" in kind:
        # 1 TensorCore, 128 MiB VMEM (32 MiB scoped default).
        return 1, 2048, 48 << 20
    # v5e & unknown: conservative; ~10 MiB double-buffered fits the 16 MiB
    # scoped-VMEM default, so leave the limit alone.
    return 1, 1024, None


# ---------------------------------------------------------------------------
# kernels
# ---------------------------------------------------------------------------
def _tile_neglog_iou(slab_ref, eps):
    """Per-box -log(IoU) for one (9, tile_s, 128) slab -> (tile_s, 128)."""
    px1, py1, px2, py2 = slab_ref[0], slab_ref[1], slab_ref[2], slab_ref[3]
    tx1, ty1, tx2, ty2 = slab_ref[4], slab_ref[5], slab_ref[6], slab_ref[7]

    area_p = (px2 - px1) * (py2 - py1)
    area_t = (tx2 - tx1) * (ty2 - ty1)

    iw = jnp.maximum(jnp.minimum(px2, tx2) - jnp.maximum(px1, tx1), 0.0)
    ih = jnp.maximum(jnp.minimum(py2, ty2) - jnp.maximum(py1, ty1), 0.0)
    overlap = iw * ih

    union = jnp.maximum(area_p + area_t - overlap, _OVERLAPS_EPS)
    # divide routed via reciprocal (EUP-side, alongside the log).
    ious = jnp.maximum(overlap * pl.reciprocal(union, approx=False), eps)
    return -jnp.log(ious)


def _iou_loss_sum_kernel(slab_ref, lsum_ref, fbsum_ref, wmax_ref, *, eps):
    """Reduction path.  Grid = (n_outer 'parallel', tiles_inner 'arbitrary').

    The three outputs are (1,1,1) blocks of (n_outer,1,1) partial results,
    resident across the inner reduction axis (initialized on the first step).
    """
    @pl.when(pl.program_id(1) == 0)
    def _():
        lsum_ref[...] = jnp.zeros_like(lsum_ref)
        fbsum_ref[...] = jnp.zeros_like(fbsum_ref)
        wmax_ref[...] = jnp.zeros_like(wmax_ref)

    w = slab_ref[8]
    loss = _tile_neglog_iou(slab_ref, eps) * w
    lsum_ref[...] += jnp.sum(loss).reshape(1, 1, 1)

    # torch's early-return fallback (pred * weight).sum() when no weight is
    # positive, computed from data already resident in VMEM (no extra XLA pass
    # over pred in the wrapper).
    coord_sum = slab_ref[0] + slab_ref[1] + slab_ref[2] + slab_ref[3]
    fbsum_ref[...] += jnp.sum(w * coord_sum).reshape(1, 1, 1)
    wmax_ref[...] = jnp.maximum(wmax_ref[...], jnp.max(w).reshape(1, 1, 1))


def _iou_loss_elem_kernel(slab_ref, loss_ref, *, eps, loss_weight):
    """Elementwise variant (reduction='none'): weight & loss_weight folded in."""
    w = slab_ref[8]
    loss_ref[...] = _tile_neglog_iou(slab_ref, eps) * (w * loss_weight)


# ---------------------------------------------------------------------------
# packing / tiling glue
# ---------------------------------------------------------------------------
def _tiling(n, num_tc, max_tile_s):
    s_needed = _cdiv(max(n, 1), 128)
    s_needed = _cdiv(s_needed, 8) * 8                 # sublane multiple of 8
    tile_s = min(max_tile_s, s_needed)
    tiles = _cdiv(s_needed, tile_s)
    # Outer 'parallel' split only pays on a multi-TC chip, and only when it
    # does not round up to a whole extra zero-padded tile of wasted DMA.
    n_outer = 2 if (num_tc >= 2 and tiles >= 2 and tiles % 2 == 0) else 1
    tiles_inner = _cdiv(tiles, n_outer)
    s_total = n_outer * tiles_inner * tile_s
    return tile_s, n_outer, tiles_inner, s_total


def _pack_inputs(pred, target, w_flat, s_total):
    """(n,4),(n,4),(n,) -> (9, s_total, 128) f32 slab, zero padded.

    Single fused jnp expression so XLA emits one pass over the inputs.
    """
    n = pred.shape[0]
    slab = jnp.concatenate(
        [jnp.transpose(pred.astype(jnp.float32)),
         jnp.transpose(target.astype(jnp.float32)),
         w_flat.astype(jnp.float32)[None, :]],
        axis=0)                                               # (9, n)
    slab = jnp.pad(slab, ((0, 0), (0, s_total * 128 - n)))
    return slab.reshape(9, s_total, 128)


def _run_sum(slab, *, tile_s, n_outer, tiles_inner, eps, vmem_limit):
    kernel = functools.partial(_iou_loss_sum_kernel, eps=float(eps))
    slab_spec = pl.BlockSpec((9, tile_s, 128),
                             lambda o, i: (0, o * tiles_inner + i, 0))
    acc_spec = pl.BlockSpec((1, 1, 1), lambda o, i: (o, 0, 0))
    acc_shape = jax.ShapeDtypeStruct((n_outer, 1, 1), jnp.float32)
    lsum, fbsum, wmax = pl.pallas_call(
        kernel,
        out_shape=(acc_shape, acc_shape, acc_shape),
        grid_spec=pltpu.PrefetchScalarGridSpec(
            num_scalar_prefetch=0,
            grid=(n_outer, tiles_inner),
            in_specs=[slab_spec],
            out_specs=[acc_spec, acc_spec, acc_spec],
        ),
        compiler_params=pltpu.CompilerParams(
            dimension_semantics=("parallel", "arbitrary"),
            vmem_limit_bytes=vmem_limit),
    )(slab)
    return jnp.sum(lsum), jnp.sum(fbsum), jnp.max(wmax)


def _run_elem(slab, *, tile_s, num_tiles, eps, loss_weight, vmem_limit):
    kernel = functools.partial(_iou_loss_elem_kernel, eps=float(eps),
                               loss_weight=float(loss_weight))
    slab_spec = pl.BlockSpec((9, tile_s, 128), lambda t: (0, t, 0))
    out_spec = pl.BlockSpec((tile_s, 128), lambda t: (t, 0))
    return pl.pallas_call(
        kernel,
        out_shape=jax.ShapeDtypeStruct((num_tiles * tile_s, 128), jnp.float32),
        grid_spec=pltpu.PrefetchScalarGridSpec(
            num_scalar_prefetch=0,
            grid=(num_tiles,),
            in_specs=[slab_spec],
            out_specs=out_spec,
        ),
        compiler_params=pltpu.CompilerParams(
            dimension_semantics=("parallel",),
            vmem_limit_bytes=vmem_limit),
    )(slab)


# ---------------------------------------------------------------------------
# module wrapper
# ---------------------------------------------------------------------------
class IoULossPallas:
    """JAX/Pallas port of nanodet IoULoss (forward only)."""

    def __init__(self, eps=1e-6, reduction='mean', loss_weight=1.0):
        self.eps = eps
        self.reduction = reduction
        self.loss_weight = loss_weight
        self._num_tc, self._max_tile_s, self._vmem_limit = _device_tuning()

    def __call__(self, pred, target, weight=None, avg_factor=None,
                 reduction_override=None):
        assert reduction_override in (None, 'none', 'mean', 'sum')
        reduction = reduction_override if reduction_override else self.reduction

        n = int(pred.shape[0])
        if n == 0:
            # TODO(synk): torch returns an empty tensor ('none') / NaN mean for
            # empty inputs; we return empty / 0.0 here.
            if reduction == 'none':
                return jnp.zeros((0,), jnp.float32)
            return jnp.zeros((), jnp.float32)

        if weight is not None:
            w = jnp.asarray(weight, jnp.float32)
            if w.ndim == 2 and w.shape[-1] == 4:
                # TODO(synk): mmdet-style per-coordinate (n,4) weights; reduce
                # to a per-box weight (mean over the coordinate axis).
                w = jnp.mean(w, axis=-1)
            w_flat = w.reshape(n)
        else:
            w_flat = jnp.ones((n,), jnp.float32)

        if reduction == 'none':
            assert avg_factor is None
            tile_s, _, num_tiles, s_total = _tiling(n, 1, self._max_tile_s)
            slab = _pack_inputs(pred, target, w_flat, s_total)
            loss = _run_elem(slab, tile_s=tile_s, num_tiles=num_tiles,
                             eps=self.eps, loss_weight=self.loss_weight,
                             vmem_limit=self._vmem_limit)
            # weight and loss_weight are already folded in; reshape is free
            # (contiguous), only the [:n] slice remains.
            return loss.reshape(-1)[:n]

        tile_s, n_outer, tiles_inner, s_total = _tiling(
            n, self._num_tc, self._max_tile_s)
        slab = _pack_inputs(pred, target, w_flat, s_total)
        total, fallback, wmax = _run_sum(
            slab, tile_s=tile_s, n_outer=n_outer, tiles_inner=tiles_inner,
            eps=self.eps, vmem_limit=self._vmem_limit)

        if reduction == 'sum':
            assert avg_factor is None
            result = self.loss_weight * total
        else:  # 'mean'
            denom = (jnp.asarray(n, jnp.float32) if avg_factor is None
                     else jnp.asarray(avg_factor, jnp.float32))
            result = self.loss_weight * total / denom

        if weight is not None:
            # torch early-returns (pred*weight).sum() (unscaled) when no weight
            # is positive; both scalars come from the same kernel pass, so this
            # select is HBM-free and jit-traceable.
            result = jnp.where(wmax > 0, result, fallback)
        return result


# ---------------------------------------------------------------------------
# pure-JAX reference (for validation)
# ---------------------------------------------------------------------------
def _reference_iou_loss(pred, target, weight=None, eps=1e-6, reduction='mean',
                        avg_factor=None, loss_weight=1.0):
    pred = pred.astype(jnp.float32)
    target = target.astype(jnp.float32)
    area1 = (pred[:, 2] - pred[:, 0]) * (pred[:, 3] - pred[:, 1])
    area2 = (target[:, 2] - target[:, 0]) * (target[:, 3] - target[:, 1])
    lt = jnp.maximum(pred[:, :2], target[:, :2])
    rb = jnp.minimum(pred[:, 2:], target[:, 2:])
    wh = jnp.maximum(rb - lt, 0.0)
    overlap = wh[:, 0] * wh[:, 1]
    union = jnp.maximum(area1 + area2 - overlap, 1e-6)
    ious = jnp.maximum(overlap / union, eps)
    loss = -jnp.log(ious)
    if weight is not None:
        loss = loss * weight
    if reduction == 'none':
        return loss_weight * loss
    total = jnp.sum(loss)
    if reduction == 'sum':
        return loss_weight * total
    denom = pred.shape[0] if avg_factor is None else avg_factor
    return loss_weight * total / denom


if __name__ == "__main__":
    key = jax.random.PRNGKey(0)
    k1, k2, k3, k4 = jax.random.split(key, 4)

    n = 8
    # Valid boxes (x1 < x2, y1 < y2); targets are perturbed preds so IoU > 0.
    xy = jax.random.uniform(k1, (n, 2), jnp.float32, 0.0, 20.0)
    wh = jax.random.uniform(k2, (n, 2), jnp.float32, 2.0, 12.0)
    pred = jnp.concatenate([xy, xy + wh], axis=-1)                   # (n, 4)
    jitter = jax.random.uniform(k3, (n, 4), jnp.float32, -1.0, 1.0)
    target = pred + jitter                                           # (n, 4)
    weight = jax.random.uniform(k4, (n,), jnp.float32, 0.0, 2.0)     # (n,)

    loss_mod = IoULossPallas(eps=1e-6, reduction='mean', loss_weight=1.0)

    out_mean = jax.block_until_ready(loss_mod(pred, target))
    out_sum = jax.block_until_ready(
        loss_mod(pred, target, reduction_override='sum'))
    out_none = jax.block_until_ready(
        loss_mod(pred, target, reduction_override='none'))
    out_wmean = jax.block_until_ready(loss_mod(pred, target, weight=weight))
    out_wnone = jax.block_until_ready(
        loss_mod(pred, target, weight=weight, reduction_override='none'))
    out_zero_w = jax.block_until_ready(
        loss_mod(pred, target, weight=jnp.zeros((n,), jnp.float32)))
    out_neg_w = jax.block_until_ready(
        loss_mod(pred, target, weight=-jnp.ones((n,), jnp.float32)))

    ref_mean = _reference_iou_loss(pred, target, reduction='mean')
    ref_sum = _reference_iou_loss(pred, target, reduction='sum')
    ref_none = _reference_iou_loss(pred, target, reduction='none')
    ref_wmean = _reference_iou_loss(pred, target, weight=weight,
                                    reduction='mean')
    ref_wnone = _reference_iou_loss(pred, target, weight=weight,
                                    reduction='none')
    ref_neg_w = -jnp.sum(pred)      # torch fallback: (pred * weight).sum()

    assert jnp.isfinite(out_mean), "loss is not finite"
    assert jnp.allclose(out_mean, ref_mean, rtol=1e-5, atol=1e-5), \
        (out_mean, ref_mean)
    assert jnp.allclose(out_sum, ref_sum, rtol=1e-5, atol=1e-5), \
        (out_sum, ref_sum)
    assert jnp.allclose(out_none, ref_none, rtol=1e-5, atol=1e-5)
    assert jnp.allclose(out_wmean, ref_wmean, rtol=1e-5, atol=1e-5), \
        (out_wmean, ref_wmean)
    assert jnp.allclose(out_wnone, ref_wnone, rtol=1e-5, atol=1e-5)
    assert jnp.allclose(out_zero_w, 0.0, atol=1e-6), out_zero_w
    assert jnp.allclose(out_neg_w, ref_neg_w, rtol=1e-5, atol=1e-5), \
        (out_neg_w, ref_neg_w)

    # loss_weight folding check.
    loss_mod2 = IoULossPallas(eps=1e-6, reduction='mean', loss_weight=2.5)
    out_lw = jax.block_until_ready(loss_mod2(pred, target, weight=weight))
    out_lw_none = jax.block_until_ready(
        loss_mod2(pred, target, weight=weight, reduction_override='none'))
    assert jnp.allclose(out_lw, 2.5 * ref_wmean, rtol=1e-5, atol=1e-5)
    assert jnp.allclose(out_lw_none, 2.5 * ref_wnone, rtol=1e-5, atol=1e-5)

    # Multi-tile reduction path (force tiny tiles so the grid has >1 step).
    n2 = 2000
    kk1, kk2, kk3 = jax.random.split(jax.random.PRNGKey(1), 3)
    xy2 = jax.random.uniform(kk1, (n2, 2), jnp.float32, 0.0, 50.0)
    wh2 = jax.random.uniform(kk2, (n2, 2), jnp.float32, 2.0, 15.0)
    pred2 = jnp.concatenate([xy2, xy2 + wh2], axis=-1)
    target2 = pred2 + jax.random.uniform(kk3, (n2, 4), jnp.float32, -1.0, 1.0)
    loss_mt = IoULossPallas(eps=1e-6, reduction='sum', loss_weight=1.0)
    loss_mt._max_tile_s = 8           # 16 sublanes needed -> 2 grid steps
    out_mt = jax.block_until_ready(loss_mt(pred2, target2))
    ref_mt = _reference_iou_loss(pred2, target2, reduction='sum')
    assert jnp.allclose(out_mt, ref_mt, rtol=1e-4, atol=1e-4), (out_mt, ref_mt)

    print("KERNEL_OK")
</pallas_src>

<mosaic_0001>
module attributes {stable_mosaic.version = 11 : i64} {
  func.func @_iou_loss_sum_kernel(%arg0: i32, %arg1: i32, %arg2: memref<9x8x128xf32, #tpu.memory_space<vmem>>, %arg3: memref<1x1x1xf32, #tpu.memory_space<vmem>>, %arg4: memref<1x1x1xf32, #tpu.memory_space<vmem>>, %arg5: memref<1x1x1xf32, #tpu.memory_space<vmem>>) attributes {dimension_semantics = [#tpu.dimension_semantics<parallel>, #tpu.dimension_semantics<arbitrary>], iteration_bounds = array<i64: 1, 1>, scalar_prefetch = 0 : i64, scratch_operands = 0 : i64, tpu.core_type = #tpu.core_type<tc>, window_params = [{transform_indices = @transform_0, window_bounds = array<i64: 9, 8, 128>}, {transform_indices = @transform_1, window_bounds = array<i64: 1, 1, 1>}, {transform_indices = @transform_2, window_bounds = array<i64: 1, 1, 1>}, {transform_indices = @transform_3, window_bounds = array<i64: 1, 1, 1>}]} {
    %c0_i32 = arith.constant 0 : i32
    %0 = arith.cmpi eq, %arg1, %c0_i32 : i32
    %1 = arith.extui %0 : i1 to i32
    %c0_i32_0 = arith.constant 0 : i32
    %2 = arith.cmpi ne, %1, %c0_i32_0 : i32
    scf.if %2 {
      %cst_56 = arith.constant 0.000000e+00 : f32
      %86 = vector.broadcast %cst_56 : f32 to vector<1x1x1xf32>
      %c0_57 = arith.constant 0 : index
      %c0_58 = arith.constant 0 : index
      %c0_59 = arith.constant 0 : index
      %87 = vector.load %arg3[%c0_57, %c0_58, %c0_59] : memref<1x1x1xf32, #tpu.memory_space<vmem>>, vector<1x1x1xf32>
      tpu.vector_store %arg3[%c0_57, %c0_58, %c0_59], %86 {strides = array<i32>} : memref<1x1x1xf32, #tpu.memory_space<vmem>>, vector<1x1x1xf32>,
      %cst_60 = arith.constant 0.000000e+00 : f32
      %88 = vector.broadcast %cst_60 : f32 to vector<1x1x1xf32>
      %c0_61 = arith.constant 0 : index
      %c0_62 = arith.constant 0 : index
      %c0_63 = arith.constant 0 : index
      %89 = vector.load %arg4[%c0_61, %c0_62, %c0_63] : memref<1x1x1xf32, #tpu.memory_space<vmem>>, vector<1x1x1xf32>
      tpu.vector_store %arg4[%c0_61, %c0_62, %c0_63], %88 {strides = array<i32>} : memref<1x1x1xf32, #tpu.memory_space<vmem>>, vector<1x1x1xf32>,
      %cst_64 = arith.constant 0.000000e+00 : f32
      %90 = vector.broadcast %cst_64 : f32 to vector<1x1x1xf32>
      %c0_65 = arith.constant 0 : index
      %c0_66 = arith.constant 0 : index
      %c0_67 = arith.constant 0 : index
      %91 = vector.load %arg5[%c0_65, %c0_66, %c0_67] : memref<1x1x1xf32, #tpu.memory_space<vmem>>, vector<1x1x1xf32>
      tpu.vector_store %arg5[%c0_65, %c0_66, %c0_67], %90 {strides = array<i32>} : memref<1x1x1xf32, #tpu.memory_space<vmem>>, vector<1x1x1xf32>,
    } else {
    }
    %c8 = arith.constant 8 : index
    %c0 = arith.constant 0 : index
    %c0_1 = arith.constant 0 : index
    %3 = vector.load %arg2[%c8, %c0, %c0_1] : memref<9x8x128xf32, #tpu.memory_space<vmem>>, vector<1x8x128xf32>
    %4 = vector.shape_cast %3 : vector<1x8x128xf32> to vector<8x128xf32>
    %c0_2 = arith.constant 0 : index
    %c0_3 = arith.constant 0 : index
    %c0_4 = arith.constant 0 : index
    %5 = vector.load %arg2[%c0_2, %c0_3, %c0_4] : memref<9x8x128xf32, #tpu.memory_space<vmem>>, vector<1x8x128xf32>
    %6 = vector.shape_cast %5 : vector<1x8x128xf32> to vector<8x128xf32>
    %c1 = arith.constant 1 : index
    %c0_5 = arith.constant 0 : index
    %c0_6 = arith.constant 0 : index
    %7 = vector.load %arg2[%c1, %c0_5, %c0_6] : memref<9x8x128xf32, #tpu.memory_space<vmem>>, vector<1x8x128xf32>
    %8 = vector.shape_cast %7 : vector<1x8x128xf32> to vector<8x128xf32>
    %c2 = arith.constant 2 : index
    %c0_7 = arith.constant 0 : index
    %c0_8 = arith.constant 0 : index
    %9 = vector.load %arg2[%c2, %c0_7, %c0_8] : memref<9x8x128xf32, #tpu.memory_space<vmem>>, vector<1x8x128xf32>
    %10 = vector.shape_cast %9 : vector<1x8x128xf32> to vector<8x128xf32>
    %c3 = arith.constant 3 : index
    %c0_9 = arith.constant 0 : index
    %c0_10 = arith.constant 0 : index
    %11 = vector.load %arg2[%c3, %c0_9, %c0_10] : memref<9x8x128xf32, #tpu.memory_space<vmem>>, vector<1x8x128xf32>
    %12 = vector.shape_cast %11 : vector<1x8x128xf32> to vector<8x128xf32>
    %c4 = arith.constant 4 : index
    %c0_11 = arith.constant 0 : index
    %c0_12 = arith.constant 0 : index
    %13 = vector.load %arg2[%c4, %c0_11, %c0_12] : memref<9x8x128xf32, #tpu.memory_space<vmem>>, vector<1x8x128xf32>
    %14 = vector.shape_cast %13 : vector<1x8x128xf32> to vector<8x128xf32>
    %c5 = arith.constant 5 : index
    %c0_13 = arith.constant 0 : index
    %c0_14 = arith.constant 0 : index
    %15 = vector.load %arg2[%c5, %c0_13, %c0_14] : memref<9x8x128xf32, #tpu.memory_space<vmem>>, vector<1x8x128xf32>
    %16 = vector.shape_cast %15 : vector<1x8x128xf32> to vector<8x128xf32>
    %c6 = arith.constant 6 : index
    %c0_15 = arith.constant 0 : index
    %c0_16 = arith.constant 0 : index
    %17 = vector.load %arg2[%c6, %c0_15, %c0_16] : memref<9x8x128xf32, #tpu.memory_space<vmem>>, vector<1x8x128xf32>
    %18 = vector.shape_cast %17 : vector<1x8x128xf32> to vector<8x128xf32>
    %c7 = arith.constant 7 : index
    %c0_17 = arith.constant 0 : index
    %c0_18 = arith.constant 0 : index
    %19 = vector.load %arg2[%c7, %c0_17, %c0_18] : memref<9x8x128xf32, #tpu.memory_space<vmem>>, vector<1x8x128xf32>
    %20 = vector.shape_cast %19 : vector<1x8x128xf32> to vector<8x128xf32>
    %21 = arith.subf %10, %6 : vector<8x128xf32>
    %22 = arith.subf %12, %8 : vector<8x128xf32>
    %23 = arith.mulf %21, %22 : vector<8x128xf32>
    %24 = arith.subf %18, %14 : vector<8x128xf32>
    %25 = arith.subf %20, %16 : vector<8x128xf32>
    %26 = arith.mulf %24, %25 : vector<8x128xf32>
    %27 = arith.minimumf %10, %18 : vector<8x128xf32>
    %28 = arith.maximumf %6, %14 : vector<8x128xf32>
    %29 = arith.subf %27, %28 : vector<8x128xf32>
    %cst = arith.constant 0.000000e+00 : f32
    %30 = vector.broadcast %cst : f32 to vector<8x128xf32>
    %31 = arith.maximumf %29, %30 : vector<8x128xf32>
    %32 = arith.minimumf %12, %20 : vector<8x128xf32>
    %33 = arith.maximumf %8, %16 : vector<8x128xf32>
    %34 = arith.subf %32, %33 : vector<8x128xf32>
    %cst_19 = arith.constant 0.000000e+00 : f32
    %35 = vector.broadcast %cst_19 : f32 to vector<8x128xf32>
    %36 = arith.maximumf %34, %35 : vector<8x128xf32>
    %37 = arith.mulf %31, %36 : vector<8x128xf32>
    %38 = arith.addf %23, %26 : vector<8x128xf32>
    %39 = arith.subf %38, %37 : vector<8x128xf32>
    %cst_20 = arith.constant 9.99999997E-7 : f32
    %40 = vector.broadcast %cst_20 : f32 to vector<8x128xf32>
    %41 = arith.maximumf %39, %40 : vector<8x128xf32>
    %42 = tpu.reciprocal %41 : vector<8x128xf32> -> vector<8x128xf32>
    %43 = arith.mulf %37, %42 : vector<8x128xf32>
    %cst_21 = arith.constant 9.99999997E-7 : f32
    %44 = vector.broadcast %cst_21 : f32 to vector<8x128xf32>
    %45 = arith.maximumf %43, %44 : vector<8x128xf32>
    %46 = math.log %45 : vector<8x128xf32>
    %cst_22 = arith.constant 0.000000e+00 : f32
    %47 = vector.broadcast %cst_22 : f32 to vector<8x128xf32>
    %48 = arith.subf %47, %46 : vector<8x128xf32>
    %49 = arith.mulf %48, %4 : vector<8x128xf32>
    %c0_23 = arith.constant 0 : index
    %c0_24 = arith.constant 0 : index
    %c0_25 = arith.constant 0 : index
    %50 = vector.load %arg3[%c0_23, %c0_24, %c0_25] : memref<1x1x1xf32, #tpu.memory_space<vmem>>, vector<1x1x1xf32>
    %51 = vector.shape_cast %49 : vector<8x128xf32> to vector<1x8x128xf32>
    %cst_26 = arith.constant dense<0.000000e+00> : vector<1xf32>
    %52 = vector.multi_reduction <add>, %51, %cst_26 [1, 2] : vector<1x8x128xf32> to vector<1xf32>
    %53 = vector.shape_cast %52 : vector<1xf32> to vector<1x1x1xf32>
    %54 = vector.extract %53[0, 0, 0] : f32 from vector<1x1x1xf32>
    %55 = vector.broadcast %54 : f32 to vector<1x1x1xf32>
    %56 = arith.addf %50, %55 : vector<1x1x1xf32>
    %c0_27 = arith.constant 0 : index
    %c0_28 = arith.constant 0 : index
    %c0_29 = arith.constant 0 : index
    %57 = vector.load %arg3[%c0_27, %c0_28, %c0_29] : memref<1x1x1xf32, #tpu.memory_space<vmem>>, vector<1x1x1xf32>
    tpu.vector_store %arg3[%c0_27, %c0_28, %c0_29], %56 {strides = array<i32>} : memref<1x1x1xf32, #tpu.memory_space<vmem>>, vector<1x1x1xf32>,
    %c0_30 = arith.constant 0 : index
    %c0_31 = arith.constant 0 : index
    %c0_32 = arith.constant 0 : index
    %58 = vector.load %arg2[%c0_30, %c0_31, %c0_32] : memref<9x8x128xf32, #tpu.memory_space<vmem>>, vector<1x8x128xf32>
    %59 = vector.shape_cast %58 : vector<1x8x128xf32> to vector<8x128xf32>
    %c1_33 = arith.constant 1 : index
    %c0_34 = arith.constant 0 : index
    %c0_35 = arith.constant 0 : index
    %60 = vector.load %arg2[%c1_33, %c0_34, %c0_35] : memref<9x8x128xf32, #tpu.memory_space<vmem>>, vector<1x8x128xf32>
    %61 = vector.shape_cast %60 : vector<1x8x128xf32> to vector<8x128xf32>
    %62 = arith.addf %59, %61 : vector<8x128xf32>
    %c2_36 = arith.constant 2 : index
    %c0_37 = arith.constant 0 : index
    %c0_38 = arith.constant 0 : index
    %63 = vector.load %arg2[%c2_36, %c0_37, %c0_38] : memref<9x8x128xf32, #tpu.memory_space<vmem>>, vector<1x8x128xf32>
    %64 = vector.shape_cast %63 : vector<1x8x128xf32> to vector<8x128xf32>
    %65 = arith.addf %62, %64 : vector<8x128xf32>
    %c3_39 = arith.constant 3 : index
    %c0_40 = arith.constant 0 : index
    %c0_41 = arith.constant 0 : index
    %66 = vector.load %arg2[%c3_39, %c0_40, %c0_41] : memref<9x8x128xf32, #tpu.memory_space<vmem>>, vector<1x8x128xf32>
    %67 = vector.shape_cast %66 : vector<1x8x128xf32> to vector<8x128xf32>
    %68 = arith.addf %65, %67 : vector<8x128xf32>
    %c0_42 = arith.constant 0 : index
    %c0_43 = arith.constant 0 : index
    %c0_44 = arith.constant 0 : index
    %69 = vector.load %arg4[%c0_42, %c0_43, %c0_44] : memref<1x1x1xf32, #tpu.memory_space<vmem>>, vector<1x1x1xf32>
    %70 = arith.mulf %4, %68 : vector<8x128xf32>
    %71 = vector.shape_cast %70 : vector<8x128xf32> to vector<1x8x128xf32>
    %cst_45 = arith.constant dense<0.000000e+00> : vector<1xf32>
    %72 = vector.multi_reduction <add>, %71, %cst_45 [1, 2] : vector<1x8x128xf32> to vector<1xf32>
    %73 = vector.shape_cast %72 : vector<1xf32> to vector<1x1x1xf32>
    %74 = vector.extract %73[0, 0, 0] : f32 from vector<1x1x1xf32>
    %75 = vector.broadcast %74 : f32 to vector<1x1x1xf32>
    %76 = arith.addf %69, %75 : vector<1x1x1xf32>
    %c0_46 = arith.constant 0 : index
    %c0_47 = arith.constant 0 : index
    %c0_48 = arith.constant 0 : index
    %77 = vector.load %arg4[%c0_46, %c0_47, %c0_48] : memref<1x1x1xf32, #tpu.memory_space<vmem>>, vector<1x1x1xf32>
    tpu.vector_store %arg4[%c0_46, %c0_47, %c0_48], %76 {strides = array<i32>} : memref<1x1x1xf32, #tpu.memory_space<vmem>>, vector<1x1x1xf32>,
    %c0_49 = arith.constant 0 : index
    %c0_50 = arith.constant 0 : index
    %c0_51 = arith.constant 0 : index
    %78 = vector.load %arg5[%c0_49, %c0_50, %c0_51] : memref<1x1x1xf32, #tpu.memory_space<vmem>>, vector<1x1x1xf32>
    %79 = vector.shape_cast %4 : vector<8x128xf32> to vector<1x8x128xf32>
    %cst_52 = arith.constant dense<0xFF800000> : vector<1xf32>
    %80 = vector.multi_reduction <maximumf>, %79, %cst_52 [1, 2] : vector<1x8x128xf32> to vector<1xf32>
    %81 = vector.shape_cast %80 : vector<1xf32> to vector<1x1x1xf32>
    %82 = vector.extract %81[0, 0, 0] : f32 from vector<1x1x1xf32>
    %83 = vector.broadcast %82 : f32 to vector<1x1x1xf32>
    %84 = arith.maximumf %78, %83 : vector<1x1x1xf32>
    %c0_53 = arith.constant 0 : index
    %c0_54 = arith.constant 0 : index
    %c0_55 = arith.constant 0 : index
    %85 = vector.load %arg5[%c0_53, %c0_54, %c0_55] : memref<1x1x1xf32, #tpu.memory_space<vmem>>, vector<1x1x1xf32>
    tpu.vector_store %arg5[%c0_53, %c0_54, %c0_55], %84 {strides = array<i32>} : memref<1x1x1xf32, #tpu.memory_space<vmem>>, vector<1x1x1xf32>,
    return
  }
  func.func @transform_0(%arg0: i32, %arg1: i32) -> (i32, i32, i32) {
    %c1_i32 = arith.constant 1 : i32
    %0 = arith.muli %arg0, %c1_i32 : i32
    %1 = arith.addi %0, %arg1 : i32
    %c0_i32 = arith.constant 0 : i32
    %c0_i32_0 = arith.constant 0 : i32
    %c0_i32_1 = arith.constant 0 : i32
    return %c0_i32, %1, %c0_i32_0 : i32, i32, i32
  }
  func.func @transform_1(%arg0: i32, %arg1: i32) -> (i32, i32, i32) {
    %c0_i32 = arith.constant 0 : i32
    %c0_i32_0 = arith.constant 0 : i32
    %c0_i32_1 = arith.constant 0 : i32
    return %arg0, %c0_i32, %c0_i32_0 : i32, i32, i32
  }
  func.func @transform_2(%arg0: i32, %arg1: i32) -> (i32, i32, i32) {
    %c0_i32 = arith.constant 0 : i32
    %c0_i32_0 = arith.constant 0 : i32
    %c0_i32_1 = arith.constant 0 : i32
    return %arg0, %c0_i32, %c0_i32_0 : i32, i32, i32
  }
  func.func @transform_3(%arg0: i32, %arg1: i32) -> (i32, i32, i32) {
    %c0_i32 = arith.constant 0 : i32
    %c0_i32_0 = arith.constant 0 : i32
    %c0_i32_1 = arith.constant 0 : i32
    return %arg0, %c0_i32, %c0_i32_0 : i32, i32, i32
  }
}

</mosaic_0001>

<llo_original>
// kernel: tpu_custom_call.1
$region0: #{tpu_custom_call.1}
  #allocation0 [shape = 'u32[]', space=smem, size = 0x4, offset = 0x4, fixed_abs, tag = 'smem constant byte address 0x4 - core index']
  #allocation1 [shape = 'u32[144,128]{1,0:T(1,128)}', space=vmem, size = 0x12000, scoped, tag = 'internal scratch']
  %s0 = inlined_call_operand.hbm [shape: f32[9,8,128], index: 0, kind: input, shape index: {}]
  %s1 = inlined_call_operand.hbm [shape: f32[1,1,1], index: 1, kind: output, shape index: {0}]
  %s2 = inlined_call_operand.hbm [shape: f32[1,1,1], index: 2, kind: output, shape index: {1}]
  %s3 = inlined_call_operand.hbm [shape: f32[1,1,1], index: 3, kind: output, shape index: {2}]
  %4 = xla_tuple %s1, %s2, %s3
  %s5 = sld [smem:[#allocation0]]
  $region38: #{tpu_custom_call.1} parent=0
    _
  %s7 = ssub.s32 1, %s5
  %s8 = scalar_select 0, %s7, %s5
  $region1: #{tpu_custom_call.1} parent=0
    #allocation2 [shape = 'u8[36864]{0}', space=vmem, size = 0x9000, scoped, tag = 'input window, operand 0, single buffered']
    #allocation3 [shape = 's32[1]{0}', space=sflag, size = 0x4, scoped, tag = 'scoped memory for tpu_custom_call.1']
    #allocation4 [shape = 's32[1]{0}', space=sflag, size = 0x4, scoped, tag = 'scoped memory for tpu_custom_call.1']
    #allocation5 [shape = 'u8[512]{0}', space=vmem, size = 0x400, scoped, tag = 'output window, operand 0, single buffered']
    #allocation6 [shape = 'u8[512]{0}', space=vmem, size = 0x400, scoped, tag = 'output window, operand 1, single buffered']
    #allocation7 [shape = 's32[1]{0}', space=sflag, size = 0x4, scoped, tag = 'scoped memory for tpu_custom_call.1']
    #allocation8 [shape = 'u8[512]{0}', space=vmem, size = 0x400, scoped, tag = 'output window, operand 2, single buffered']
    %9 = vsyncpa [#allocation3], 0
    %10 = vsyncpa [#allocation4], 0
    %11 = vsyncpa [#allocation7], 0
    // Predicated region
    $region2: #{tpu_custom_call.1} parent=1 // pred_check
      _
    $region3: #{tpu_custom_call.1} parent=1 // pred_check_branch
      %13 = sbr.rel (0) target = $region5
    $region4: #{tpu_custom_call.1} parent=1 // pred_region
      %s14 = sadd.s32 0, 0
      %s16 = ssub.s32 1152, 1152
      %17 = vsyncadd [#allocation3], %s16
      %s18 = smul.addr %s14, 128
      %s19 = scalar_lea.hbm %s0, %s18
      %s20 = sshll.u32 [#allocation2], 4
      %s21 = int_to_ptr.vmem [resolvable:$true] %s20
      %26 = dma.hbm_to_vmem [thread:$0]  %s19, 1152, %s21, [#allocation3], 128, 128, 8
    $region5: #{tpu_custom_call.1} parent=1 // pred_fallthru
      _
    // Predicated region
    $region6: #{tpu_custom_call.1} parent=1 // pred_check
      _
    $region7: #{tpu_custom_call.1} parent=1 // pred_check_branch
      %28 = sbr.rel (0) target = $region9
    $region8: #{tpu_custom_call.1} parent=1 // pred_region
      %29 = dma.done [#allocation3], 1152
    $region9: #{tpu_custom_call.1} parent=1 // pred_fallthru
      _
    %s30 = sadd.s32 0, 0
    %p31 = scmp.eq.s32.totalorder 0, 0
    // Predicated region
    $region10: #{tpu_custom_call.1} parent=1 // pred_check
      %p32 = pneg %p31
    $region11: #{tpu_custom_call.1} parent=1 // pred_check_branch
      %34 = sbr.rel (%p32) target = $region13
    $region12: #{tpu_custom_call.1} parent=1 // pred_region
      %vm35 = vcmask 0
      %36 = vst.msk [vmem:[#allocation5] sm:$0x1] %vm35, 0.0
      %37 = vst.msk [vmem:[#allocation6] sm:$0x1] %vm35, 0.0
      %38 = vst.msk [vmem:[#allocation8] sm:$0x1] %vm35, 0.0
    $region13: #{tpu_custom_call.1} parent=1 // pred_fallthru
      _
    %s39 = scalar_lea.vmem [#allocation2], 64
    %v40 = vld [vmem:[%s39] sm:$0xff]
    %v41 = vld [vmem:[#allocation2] sm:$0xff]
    %s42 = scalar_lea.vmem [#allocation2], 8
    %v43 = vld [vmem:[%s42] sm:$0xff]
    %s44 = scalar_lea.vmem [#allocation2], 16
    %v45 = vld [vmem:[%s44] sm:$0xff]
    %s46 = scalar_lea.vmem [#allocation2], 24
    %v47 = vld [vmem:[%s46] sm:$0xff]
    %s48 = scalar_lea.vmem [#allocation2], 32
    %v49 = vld [vmem:[%s48] sm:$0xff]
    %s50 = scalar_lea.vmem [#allocation2], 40
    %v51 = vld [vmem:[%s50] sm:$0xff]
    %s52 = scalar_lea.vmem [#allocation2], 48
    %v53 = vld [vmem:[%s52] sm:$0xff]
    %s54 = scalar_lea.vmem [#allocation2], 56
    %v55 = vld [vmem:[%s54] sm:$0xff]
    %v56 = vsub.f32 %v45, %v41
    %v57 = vsub.f32 %v47, %v43
    %v58 = vmul.f32 %v56, %v57
    %v59 = vsub.f32 %v53, %v49
    %v60 = vsub.f32 %v55, %v51
    %v61 = vmul.f32 %v59, %v60
    %v62 = vmin.f32 %v45, %v53
    %v63 = vmax.f32 %v41, %v49
    %v64 = vsub.f32 %v62, %v63
    %v65 = vmax.f32 %v64, 0.0
    %v66 = vmin.f32 %v47, %v55
    %v67 = vmax.f32 %v43, %v51
    %v68 = vsub.f32 %v66, %v67
    %v69 = vmax.f32 %v68, 0.0
    %v70 = vmul.f32 %v65, %v69
    %v71 = vadd.f32 %v58, %v61
    %v72 = vsub.f32 %v71, %v70
    %v73 = vmax.f32 %v72, 1e-06
    %v74 = vrcp.pop %v73
    %v75 = vmul.f32 %v70, %v74
    %v76 = vmax.f32 %v75, 1e-06
    %v77 = vlog2.pop %v76
    %v78 = vmul.f32 %v77, 0.6931472
    %v79 = vsub.f32 0.0, %v78
    %v80 = vmul.f32 %v79, %v40
    %v81 = vld [vmem:[#allocation5] sm:$0x1]
    %82 = vadd.xlane.f32.xlu0 %v80
    %v83 = vpop.xlane.xlu0 %82
    %v84 = vrot.slane %v83, 4
    %v85 = vadd.f32 %v83, %v84
    %v86 = vrot.slane %v85, 2
    %v87 = vadd.f32 %v85, %v86
    %v88 = vrot.slane %v87, 1
    %v89 = vadd.f32 %v87, %v88
    %s90 = vtos %v89
    %v91 = vstv %s90
    %v92 = vadd.f32 %v81, %v91
    %vm93 = vcmask 0
    %94 = vst.msk [vmem:[#allocation5] sm:$0x1] %vm93, %v92
    %v95 = vld [vmem:[#allocation2] sm:$0xff]
    %v96 = vld [vmem:[%s42] sm:$0xff]
    %v97 = vadd.f32 %v95, %v96
    %v98 = vld [vmem:[%s44] sm:$0xff]
    %v99 = vadd.f32 %v97, %v98
    %v100 = vld [vmem:[%s46] sm:$0xff]
    %v101 = vadd.f32 %v99, %v100
    %v102 = vld [vmem:[#allocation6] sm:$0x1]
    %v103 = vmul.f32 %v40, %v101
    %104 = vadd.xlane.f32.xlu0 %v103
    %v105 = vpop.xlane.xlu0 %104
    %v106 = vrot.slane %v105, 4
    %v107 = vadd.f32 %v105, %v106
    %v108 = vrot.slane %v107, 2
    %v109 = vadd.f32 %v107, %v108
    %v110 = vrot.slane %v109, 1
    %v111 = vadd.f32 %v109, %v110
    %s112 = vtos %v111
    %v113 = vstv %s112
    %v114 = vadd.f32 %v102, %v113
    %115 = vst.msk [vmem:[#allocation6] sm:$0x1] %vm93, %v114
    %v116 = vld [vmem:[#allocation8] sm:$0x1]
    %117 = vmax.xlane.f32.xlu0 %v40
    %v118 = vpop.xlane.xlu0 %117
    %v119 = vrot.slane %v118, 4
    %v120 = vmax.f32 %v118, %v119
    %v121 = vrot.slane %v120, 2
    %v122 = vmax.f32 %v120, %v121
    %v123 = vrot.slane %v122, 1
    %v124 = vmax.f32 %v122, %v123
    %s125 = vtos %v124
    %v126 = vstv %s125
    %v127 = vmax.f32 %v116, %v126
    %128 = vst.msk [vmem:[#allocation8] sm:$0x1] %vm93, %v127
    // Predicated region
    $region14: #{tpu_custom_call.1} parent=1 // pred_check
      _
    $region15: #{tpu_custom_call.1} parent=1 // pred_check_branch
      %130 = sbr.rel (0) target = $region17
    $region16: #{tpu_custom_call.1} parent=1 // pred_region
      %s132 = ssub.s32 16, 16
      %133 = vsyncadd [#allocation4], %s132
      %s135 = sshll.u32 [#allocation5], 4
      %s136 = int_to_ptr.vmem [resolvable:$true] %s135
      %138 = dma.vmem_to_hbm [thread:$0]  %s136, 16, %s1, [#allocation4]
    $region17: #{tpu_custom_call.1} parent=1 // pred_fallthru
      _
    // Predicated region
    $region18: #{tpu_custom_call.1} parent=1 // pred_check
      _
    $region19: #{tpu_custom_call.1} parent=1 // pred_check_branch
      %140 = sbr.rel (0) target = $region21
    $region20: #{tpu_custom_call.1} parent=1 // pred_region
      %s142 = ssub.s32 16, 16
      %143 = vsyncadd [#allocation7], %s142
      %s145 = sshll.u32 [#allocation6], 4
      %s146 = int_to_ptr.vmem [resolvable:$true] %s145
      %148 = dma.vmem_to_hbm [thread:$0]  %s146, 16, %s2, [#allocation7]
    $region21: #{tpu_custom_call.1} parent=1 // pred_fallthru
      _
    // Predicated region
    $region22: #{tpu_custom_call.1} parent=1 // pred_check
      _
    $region23: #{tpu_custom_call.1} parent=1 // pred_check_branch
      %150 = sbr.rel (0) target = $region25
    $region24: #{tpu_custom_call.1} parent=1 // pred_region
      %s152 = ssub.s32 16, 16
      %153 = vsyncadd [#allocation7], %s152
      %s155 = sshll.u32 [#allocation8], 4
      %s156 = int_to_ptr.vmem [resolvable:$true] %s155
      %158 = dma.vmem_to_hbm [thread:$0]  %s156, 16, %s3, [#allocation7]
    $region25: #{tpu_custom_call.1} parent=1 // pred_fallthru
      _
    // Predicated region
    $region26: #{tpu_custom_call.1} parent=1 // pred_check
      _
    $region27: #{tpu_custom_call.1} parent=1 // pred_check_branch
      %160 = sbr.rel (0) target = $region29
    $region28: #{tpu_custom_call.1} parent=1 // pred_region
      %161 = dma.done [#allocation4], 16
    $region29: #{tpu_custom_call.1} parent=1 // pred_fallthru
      _
    // Predicated region
    $region30: #{tpu_custom_call.1} parent=1 // pred_check
      _
    $region31: #{tpu_custom_call.1} parent=1 // pred_check_branch
      %163 = sbr.rel (0) target = $region33
    $region32: #{tpu_custom_call.1} parent=1 // pred_region
      %164 = dma.done [#allocation7], 16
    $region33: #{tpu_custom_call.1} parent=1 // pred_fallthru
      _
    // Predicated region
    $region34: #{tpu_custom_call.1} parent=1 // pred_check
      _
    $region35: #{tpu_custom_call.1} parent=1 // pred_check_branch
      %166 = sbr.rel (0) target = $region37
    $region36: #{tpu_custom_call.1} parent=1 // pred_region
      %167 = dma.done [#allocation7], 16
    $region37: #{tpu_custom_call.1} parent=1 // pred_fallthru
      _
    %168 = vsyncpa [#allocation3], 1
    %169 = vsyncpa [#allocation4], 1
    %170 = vsyncpa [#allocation7], 1

</llo_original>
